<compile_context>
chip_gen: v7x
topology: tpu7x:2x2x1
jax: 0.10.0
libtpu: 0.0.40
codegen_flags: <defaults>
</compile_context>

<pallas_src>
import jax
import jax.numpy as jnp
from jax.experimental import pallas as pl
from jax.experimental.pallas import tpu as pltpu


def _laplacian_pe_kernel(lap_ref, out_ref):
    # lap_ref: (TN, lape_dim) VMEM tile; out_ref: (lape_dim, TN) VMEM tile.
    # Transpose lowers to XLU vxpose — free against the DMA-bound roofline.
    out_ref[...] = jnp.transpose(lap_ref[...], (1, 0))


def _round_up(x: int, m: int) -> int:
    return ((x + m - 1) // m) * m


def _tensorcores_per_chip() -> int:
    """Best-effort chip-generation probe (v7x has 2 TensorCores per chip)."""
    try:
        kind = jax.devices()[0].device_kind.lower()
    except Exception:  # pragma: no cover - defensive; default to single TC.
        return 1
    return 2 if ("v7" in kind or "7x" in kind) else 1


def _pick_tile_n(n: int, lape_dim: int, itemsize: int, num_tc: int) -> int:
    """Pick a lane-dense N-tile sized against honest (padded) VMEM footprints."""
    if n <= 128:
        # Small graphs: single full-array block (block dims == array dims is
        # always legal w.r.t. the (8,128) BlockSpec rule).
        return n

    # Sublane packing: f32 -> 8 rows/vreg, bf16 -> 16, int8 -> 32.
    sublane = max(8, 32 // max(1, itemsize))
    lane_padded_n = _round_up(n, 128)

    def footprint(tn: int) -> int:
        # Input tile (TN, lape_dim): last dim pads to a 128-lane column,
        # second-last to a sublane group. Output tile (lape_dim, TN): last dim
        # pads to 128 lanes, second-last to a sublane group. Each tile is
        # double-buffered by the BlockSpec pipeline.
        in_b = _round_up(tn, sublane) * _round_up(lape_dim, 128) * itemsize
        out_b = _round_up(lape_dim, sublane) * _round_up(tn, 128) * itemsize
        return 2 * (in_b + out_b)

    # Budget well under v7x's 32 MiB scoped-VMEM default (tightest chip).
    budget_bytes = 8 * 1024 * 1024

    # Base cap: 2048 lanes, clamped to the lane-padded array size so mid-size
    # graphs don't get an overhanging, mostly-masked block.
    tn = min(2048, lane_padded_n)

    # v7x: give the second TensorCore something to do on large graphs, but
    # never shrink tiles below 512 lanes (HBM-roofline floor for tiled
    # mem-bound kernels). Single-TC chips keep the big tile.
    if num_tc >= 2 and n >= 1024:
        half = _round_up(pl.cdiv(n, 2), 128)
        tn = min(tn, max(512, half))

    # Shrink (in 128-lane steps) until the padded footprint fits the budget.
    while tn > 128 and footprint(tn) > budget_bytes:
        tn -= 128

    tn = max(128, (tn // 128) * 128)  # lane-dense multiple of 128
    return tn


def laplacian_pe(lap_mx: jax.Array, *, force_pallas: bool = False) -> jax.Array:
    """Pallas implementation of LaplacianPE.forward.

    Args:
      lap_mx: [N, lape_dim] array.
      force_pallas: if True, always take the Pallas kernel path (used for
        testing the kernel itself on tiny shapes).
    Returns:
      [1, lape_dim, N, 1] array (same dtype), matching
      lap_mx.unsqueeze(0).unsqueeze(-1).transpose(1, 2) in PyTorch.
    """
    n, lape_dim = lap_mx.shape
    itemsize = jnp.dtype(lap_mx.dtype).itemsize

    # Tiny-input fast path: launch overhead of a custom call dwarfs moving a
    # few KiB, and leaving it as plain XLA lets the transpose fuse away into
    # the consumer. This is the dominant real-world win for this module.
    if not force_pallas and (n < 128 or n * lape_dim * itemsize < 64 * 1024):
        return jnp.swapaxes(lap_mx, 0, 1)[None, :, :, None]

    num_tc = _tensorcores_per_chip()
    tn = _pick_tile_n(n, lape_dim, itemsize, num_tc)

    transposed = pl.pallas_call(
        _laplacian_pe_kernel,
        out_shape=jax.ShapeDtypeStruct((lape_dim, n), lap_mx.dtype),
        grid=(pl.cdiv(n, tn),),
        in_specs=[pl.BlockSpec((tn, lape_dim), lambda i: (i, 0))],
        out_specs=pl.BlockSpec((lape_dim, tn), lambda i: (0, i)),
        compiler_params=pltpu.CompilerParams(
            dimension_semantics=("parallel",),
        ),
        cost_estimate=pl.CostEstimate(
            flops=0,
            transcendentals=0,
            bytes_accessed=2 * n * lape_dim * itemsize,
        ),
    )(lap_mx)

    # Free metadata reshapes: add the size-1 batch dim (unsqueeze(0)) and
    # trailing dim (unsqueeze(-1)) to exactly match the PyTorch output shape.
    return transposed[None, :, :, None]


if __name__ == "__main__":
    # LaplacianPE(lape_dim, embed_dim) has no parameters — __init__ only calls
    # super().__init__(), so nothing to initialize.
    key = jax.random.PRNGKey(0)

    def _ref(x):
        return jnp.transpose(x[None, :, :, None], (0, 2, 1, 3))

    # 1) Realistic tiny shape: 16 graph nodes, 8 eigvec dims (fast path).
    N, LAPE_DIM = 16, 8
    lap_mx = jax.random.normal(key, (N, LAPE_DIM), dtype=jnp.float32)
    out = jax.block_until_ready(laplacian_pe(lap_mx))
    assert out.shape == (1, LAPE_DIM, N, 1), out.shape
    assert jnp.array_equal(out, _ref(lap_mx))

    # 2) Same tiny shape, forced through the Pallas kernel (full-array block).
    out_p = jax.block_until_ready(laplacian_pe(lap_mx, force_pallas=True))
    assert out_p.shape == (1, LAPE_DIM, N, 1), out_p.shape
    assert jnp.array_equal(out_p, _ref(lap_mx))

    # 3) Mid-size graph, forced through the tiled Pallas path (tn clamped to
    #    the lane-padded size; partial last block exercised).
    N2, LAPE_DIM2 = 300, 8
    lap_mx2 = jax.random.normal(jax.random.PRNGKey(1), (N2, LAPE_DIM2),
                                dtype=jnp.float32)
    out2 = jax.block_until_ready(laplacian_pe(lap_mx2, force_pallas=True))
    assert out2.shape == (1, LAPE_DIM2, N2, 1), out2.shape
    assert jnp.array_equal(out2, _ref(lap_mx2))

    print("KERNEL_OK")
</pallas_src>

<mosaic_0001>
module attributes {stable_mosaic.version = 11 : i64} {
  func.func @_laplacian_pe_kernel(%arg0: i32, %arg1: memref<16x8xf32, #tpu.memory_space<vmem>>, %arg2: memref<8x16xf32, #tpu.memory_space<vmem>>) attributes {dimension_semantics = [#tpu.dimension_semantics<parallel>], iteration_bounds = array<i64: 1>, scalar_prefetch = 0 : i64, scratch_operands = 0 : i64, tpu.core_type = #tpu.core_type<tc>, window_params = [{transform_indices = @transform_0, window_bounds = array<i64: 16, 8>}, {transform_indices = @transform_1, window_bounds = array<i64: 8, 16>}]} {
    %c0 = arith.constant 0 : index
    %c0_0 = arith.constant 0 : index
    %0 = vector.load %arg1[%c0, %c0_0] : memref<16x8xf32, #tpu.memory_space<vmem>>, vector<16x8xf32>
    %1 = tpu.transpose %0, [1, 0] : vector<16x8xf32> -> vector<8x16xf32>
    %c0_1 = arith.constant 0 : index
    %c0_2 = arith.constant 0 : index
    %2 = vector.load %arg2[%c0_1, %c0_2] : memref<8x16xf32, #tpu.memory_space<vmem>>, vector<8x16xf32>
    tpu.vector_store %arg2[%c0_1, %c0_2], %1 {strides = array<i32>} : memref<8x16xf32, #tpu.memory_space<vmem>>, vector<8x16xf32>,
    return
  }
  func.func @transform_0(%arg0: i32) -> (i32, i32) {
    %c0_i32 = arith.constant 0 : i32
    %c0_i32_0 = arith.constant 0 : i32
    return %arg0, %c0_i32 : i32, i32
  }
  func.func @transform_1(%arg0: i32) -> (i32, i32) {
    %c0_i32 = arith.constant 0 : i32
    %c0_i32_0 = arith.constant 0 : i32
    return %c0_i32, %arg0 : i32, i32
  }
}

</mosaic_0001>

<llo_original>
// kernel: tpu_custom_call.1
$region0: #{tpu_custom_call.1}
  #allocation0 [shape = 'u32[]', space=smem, size = 0x4, offset = 0x4, fixed_abs, tag = 'smem constant byte address 0x4 - core index']
  #allocation1 [shape = 'u32[144,128]{1,0:T(1,128)}', space=vmem, size = 0x12000, scoped, tag = 'internal scratch']
  %s0 = inlined_call_operand.vmem [shape: f32[16,8], index: 0, kind: input, shape index: {}]
  %s1 = inlined_call_operand.hbm [shape: f32[8,16], index: 1, kind: output, shape index: {}]
  %s2 = sld [smem:[#allocation0]]
  $region14: #{tpu_custom_call.1} parent=0
    _
  %s4 = ssub.s32 1, %s2
  %s5 = scalar_select 0, %s4, %s2
  $region1: #{tpu_custom_call.1} parent=0
    #allocation2 [shape = 'u8[4096]{0}', space=vmem, size = 0x1000, scoped, tag = 'output window, operand 0, single buffered']
    #allocation3 [shape = 's32[1]{0}', space=sflag, size = 0x4, scoped, tag = 'scoped memory for tpu_custom_call.1']
    %6 = vsyncpa [#allocation3], 0
    // Predicated region
    $region2: #{tpu_custom_call.1} parent=1 // pred_check
      _
    $region3: #{tpu_custom_call.1} parent=1 // pred_check_branch
      %8 = sbr.rel (0) target = $region5
    $region4: #{tpu_custom_call.1} parent=1 // pred_region
      _
    $region5: #{tpu_custom_call.1} parent=1 // pred_fallthru
      _
    %v9 = vld [vmem:[%s0] sm:$0xff]
    %v10 = vld [vmem:[%s0 + $0x8] sm:$0xff]
    %11 = vxpose.xlu0.b32.start [1/16] %v9, 128
    %12 = vxpose.xlu0.b32.cont [2/16] %v10, 128
    %13 = vxpose.xlu0.b32.cont [3/16] 0.0, 128
    %14 = vxpose.xlu0.b32.cont [4/16] 0.0, 128
    %15 = vxpose.xlu0.b32.cont [5/16] 0.0, 128
    %16 = vxpose.xlu0.b32.cont [6/16] 0.0, 128
    %17 = vxpose.xlu0.b32.cont [7/16] 0.0, 128
    %18 = vxpose.xlu0.b32.cont [8/16] 0.0, 128
    %19 = vxpose.xlu0.b32.cont [9/16] 0.0, 128
    %20 = vxpose.xlu0.b32.cont [10/16] 0.0, 128
    %21 = vxpose.xlu0.b32.cont [11/16] 0.0, 128
    %22 = vxpose.xlu0.b32.cont [12/16] 0.0, 128
    %23 = vxpose.xlu0.b32.cont [13/16] 0.0, 128
    %24 = vxpose.xlu0.b32.cont [14/16] 0.0, 128
    %25 = vxpose.xlu0.b32.cont [15/16] 0.0, 128
    %26 = vxpose.xlu0.b32.end [16/16] 0.0, 128
    %v27 = vpop.trf.xlu0
    %v28 = vpop.trf.xlu0
    %v29 = vpop.trf.xlu0
    %v30 = vpop.trf.xlu0
    %v31 = vpop.trf.xlu0
    %v32 = vpop.trf.xlu0
    %v33 = vpop.trf.xlu0
    %v34 = vpop.trf.xlu0
    %v35 = vpop.trf.xlu0
    %v36 = vpop.trf.xlu0
    %v37 = vpop.trf.xlu0
    %v38 = vpop.trf.xlu0
    %v39 = vpop.trf.xlu0
    %v40 = vpop.trf.xlu0
    %v41 = vpop.trf.xlu0
    %v42 = vpop.trf.xlu0
    %vm43 = vcmask 130048
    %44 = vst.msk [vmem:[#allocation2] sm:$0xff] %vm43, %v27
    // Predicated region
    $region6: #{tpu_custom_call.1} parent=1 // pred_check
      _
    $region7: #{tpu_custom_call.1} parent=1 // pred_check_branch
      %46 = sbr.rel (0) target = $region9
    $region8: #{tpu_custom_call.1} parent=1 // pred_region
      %s48 = ssub.s32 128, 128
      %49 = vsyncadd [#allocation3], %s48
      %s51 = sshll.u32 [#allocation2], 4
      %s52 = int_to_ptr.vmem [resolvable:$true] %s51
      %54 = dma.vmem_to_hbm [thread:$0]  %s52, 128, %s1, [#allocation3]
    $region9: #{tpu_custom_call.1} parent=1 // pred_fallthru
      _
    // Predicated region
    $region10: #{tpu_custom_call.1} parent=1 // pred_check
      _
    $region11: #{tpu_custom_call.1} parent=1 // pred_check_branch
      %56 = sbr.rel (0) target = $region13
    $region12: #{tpu_custom_call.1} parent=1 // pred_region
      %57 = dma.done [#allocation3], 128
    $region13: #{tpu_custom_call.1} parent=1 // pred_fallthru
      _
    %58 = vsyncpa [#allocation3], 1

</llo_original>
